<compile_context>
chip_gen: v6e
topology: v6e:2x2x1
jax: 0.10.0
libtpu: 0.0.40
codegen_flags: <defaults>
</compile_context>

<pallas_src>
import math

import jax
import jax.numpy as jnp
from jax.experimental import pallas as pl
from jax.experimental.pallas import tpu as pltpu

_LANE = 128
_PACK = 16          # bf16 sublane packing; batch tiles & K0 pad use this


def _round_up(x, m):
    return ((x + m - 1) // m) * m


def _tile_batch(batch, batch_tile):
    """Pick a batch tile (multiple of 16) and padded batch.

    If the whole batch would fit in one tile but is big enough, split it in
    two so the ("parallel",) grid axis can shard over v7x's 2 TensorCores.
    """
    bp = _round_up(batch, _PACK)
    tb = min(_round_up(batch_tile, _PACK), bp)
    if bp // tb < 2 and bp >= 2 * _PACK:
        tb = _round_up(bp // 2, _PACK)
    batch_pad = _round_up(bp, tb)
    return tb, batch_pad


# ----------------------------------------------------------------------------
# Kernel builder (deterministic and stochastic share one maker)
# ----------------------------------------------------------------------------
def _make_mlp_kernel(n_layers, activations, f_out, policy_class, act_pad,
                     emit_stats, compute_dtype):
    stochastic = policy_class == "stochastic"

    def kernel(*refs):
        if stochastic:
            x_ref, eps_ref = refs[0], refs[1]
            p0 = 2
        else:
            x_ref = refs[0]
            p0 = 1
        param_refs = refs[p0:p0 + 2 * n_layers]
        out_refs = refs[p0 + 2 * n_layers:]

        h = x_ref[...]                                   # compute_dtype
        for i in range(n_layers):
            w = param_refs[2 * i][...]                   # compute_dtype
            b = param_refs[2 * i + 1][...]               # f32, (1, out)
            y = jnp.dot(h, w, preferred_element_type=jnp.float32) + b
            if i < n_layers - 1:
                # activation in f32, cast back for the next bf16 MXU matmul
                h = activations[i](y).astype(compute_dtype)
            else:
                h = y                                    # final pre-activation, f32

        if not stochastic:
            out_refs[0][...] = f_out[0](h).astype(out_refs[0].dtype)
            return

        # Lane-dense split: the cov head starts at a 128-aligned column.
        mean = f_out[0](h[:, :act_pad])
        cov = f_out[1](h[:, act_pad:])
        eps = eps_ref[...]                               # f32 N(0,1) noise
        out_refs[0][...] = (mean + cov * eps).astype(out_refs[0].dtype)
        if emit_stats:
            out_refs[1][...] = mean.astype(out_refs[1].dtype)
            out_refs[2][...] = cov.astype(out_refs[2].dtype)

    return kernel


# ----------------------------------------------------------------------------
# Parameter padding (done once, outside the per-call path)
# ----------------------------------------------------------------------------
def _pad_params(params, policy_class, act_dim, compute_dtype):
    """Zero-pad layers to TPU-friendly shapes.

    Layer 0 input (K) dim is padded only to 16; hidden/output lane dims are
    padded to 128.  For 'stochastic', the mean and cov column blocks of the
    last layer are padded independently so the split is 128-aligned.
    Zero padding is exact for element-wise activations / f_out.
    Weights are stored in `compute_dtype` (bf16), biases stay f32.
    """
    padded = []
    n = len(params)
    for i, (w, b) in enumerate(params):
        w = jnp.asarray(w, jnp.float32)
        b = jnp.asarray(b, jnp.float32).reshape(1, -1)
        in_dim, out_dim = w.shape
        in_pad = _round_up(in_dim, _PACK if i == 0 else _LANE)
        if policy_class == "stochastic" and i == n - 1:
            act_pad = _round_up(act_dim, _LANE)
            wp = jnp.zeros((in_pad, 2 * act_pad), jnp.float32)
            wp = wp.at[:in_dim, :act_dim].set(w[:, :act_dim])
            wp = wp.at[:in_dim, act_pad:act_pad + act_dim].set(w[:, act_dim:])
            bp = jnp.zeros((1, 2 * act_pad), jnp.float32)
            bp = bp.at[:, :act_dim].set(b[:, :act_dim])
            bp = bp.at[:, act_pad:act_pad + act_dim].set(b[:, act_dim:])
        else:
            out_pad = _round_up(out_dim, _LANE)
            wp = jnp.zeros((in_pad, out_pad), jnp.float32)
            wp = wp.at[:in_dim, :out_dim].set(w)
            bp = jnp.zeros((1, out_pad), jnp.float32)
            bp = bp.at[:, :out_dim].set(b)
        padded.append((wp.astype(compute_dtype), bp))
    return padded


# ----------------------------------------------------------------------------
# Builder: pad once, return a jitted forward
# ----------------------------------------------------------------------------
def make_policy_forward(params, *, policy_class, activations, f_out,
                        return_stats=False, batch_tile=256,
                        compute_dtype=jnp.bfloat16):
    """Build a jitted Policy forward.

    params: list of UNpadded (W, b), W: (in_dim, out_dim), b: (1, out_dim).
    Returns:
      deterministic: forward(state) -> action (batch, act_dim)
      stochastic:    forward(state, key) -> sample (batch, act_dim)
                     [or (sample, mean, cov) if return_stats]
    """
    n_layers = len(params)
    state_dim = params[0][0].shape[0]
    last_out = params[-1][0].shape[1]
    act_dim = last_out // 2 if policy_class == "stochastic" else last_out
    act_pad = _round_up(act_dim, _LANE)

    pparams = _pad_params(params, policy_class, act_dim, compute_dtype)
    s_pad = pparams[0][0].shape[0]
    flat_params = []
    for w, b in pparams:
        flat_params += [w, b]
    flat_params = tuple(flat_params)
    param_bytes = sum(int(a.size) * a.dtype.itemsize for a in flat_params)
    in_itemsize = flat_params[0].dtype.itemsize

    kernel = _make_mlp_kernel(n_layers, activations, f_out, policy_class,
                              act_pad, return_stats, compute_dtype)

    # Weights/biases: full-array, VMEM-resident across all batch tiles.
    vmem_full = pl.BlockSpec(memory_space=pltpu.VMEM)
    param_specs = [vmem_full] * len(flat_params)

    def _compiler_params(tb, out_lanes):
        io_bytes = 2 * tb * (s_pad * in_itemsize + out_lanes * 4)
        budget = param_bytes + io_bytes + (2 << 20)
        return pltpu.CompilerParams(
            dimension_semantics=("parallel",),
            vmem_limit_bytes=int(min(max(2 * budget, 24 << 20), 96 << 20)))

    if policy_class == "deterministic":
        out_pad = pparams[-1][0].shape[1]

        @jax.jit
        def forward(state):
            batch = state.shape[0]
            tb, batch_pad = _tile_batch(batch, batch_tile)
            grid = (batch_pad // tb,)
            xp = jnp.zeros((batch_pad, s_pad), compute_dtype)
            xp = xp.at[:batch, :state_dim].set(state.astype(compute_dtype))
            out = pl.pallas_call(
                kernel,
                grid=grid,
                out_shape=jax.ShapeDtypeStruct((batch_pad, out_pad),
                                               jnp.float32),
                in_specs=[pl.BlockSpec((tb, s_pad), lambda i: (i, 0))]
                         + param_specs,
                out_specs=pl.BlockSpec((tb, out_pad), lambda i: (i, 0)),
                compiler_params=_compiler_params(tb, out_pad),
            )(xp, *flat_params)
            return out[:batch, :act_dim]

        return forward

    # ------------------------- stochastic -------------------------
    @jax.jit
    def forward(state, key):
        batch = state.shape[0]
        tb, batch_pad = _tile_batch(batch, batch_tile)
        grid = (batch_pad // tb,)
        xp = jnp.zeros((batch_pad, s_pad), compute_dtype)
        xp = xp.at[:batch, :state_dim].set(state.astype(compute_dtype))
        # MultivariateNormal(0, I).sample((batch,)) == iid standard normals.
        # Generated outside the Pallas body (fuses into this jit dispatch);
        # keeps the EUP-bound kernel free of Box-Muller work.
        eps = jax.random.normal(key, (batch_pad, act_pad), jnp.float32)

        n_out = 3 if return_stats else 1
        tile_spec = pl.BlockSpec((tb, act_pad), lambda i: (i, 0))
        out_shape1 = jax.ShapeDtypeStruct((batch_pad, act_pad), jnp.float32)
        if return_stats:
            out_shapes = (out_shape1, out_shape1, out_shape1)
            out_specs = (tile_spec, tile_spec, tile_spec)
        else:
            out_shapes = out_shape1
            out_specs = tile_spec

        outs = pl.pallas_call(
            kernel,
            grid=grid,
            out_shape=out_shapes,
            in_specs=[pl.BlockSpec((tb, s_pad), lambda i: (i, 0)), tile_spec]
                     + param_specs,
            out_specs=out_specs,
            compiler_params=_compiler_params(tb, (n_out + 1) * act_pad),
        )(xp, eps, *flat_params)

        if return_stats:
            sample, mean, cov = outs
            return (sample[:batch, :act_dim], mean[:batch, :act_dim],
                    cov[:batch, :act_dim])
        return outs[:batch, :act_dim]

    return forward


# ----------------------------------------------------------------------------
# Deterministic parameter init (matches nn.Linear + xavier_uniform_)
# ----------------------------------------------------------------------------
def init_params(key, neurons, policy_class):
    dims = list(neurons)
    if policy_class == "stochastic":
        dims[-1] = 2 * dims[-1]
    params = []
    for i in range(1, len(dims)):
        fan_in, fan_out = dims[i - 1], dims[i]
        key, kw, kb = jax.random.split(key, 3)
        bound_w = math.sqrt(6.0 / (fan_in + fan_out))     # xavier_uniform_
        w = jax.random.uniform(kw, (fan_in, fan_out), jnp.float32,
                               minval=-bound_w, maxval=bound_w)
        bound_b = 1.0 / math.sqrt(fan_in)                 # nn.Linear bias init
        b = jax.random.uniform(kb, (1, fan_out), jnp.float32,
                               minval=-bound_b, maxval=bound_b)
        params.append((w, b))
    return params


# Pure-JAX reference with the SAME precision policy (bf16 matmuls, f32 rest).
def _reference_mlp(state, params, activations, f_out, policy_class,
                   compute_dtype):
    h = state.astype(compute_dtype)
    n = len(params)
    for i, (w, b) in enumerate(params):
        y = jnp.dot(h, w.astype(compute_dtype),
                    preferred_element_type=jnp.float32) + b
        if i < n - 1:
            h = activations[i](y).astype(compute_dtype)
        else:
            h = y
    if policy_class == "deterministic":
        return f_out[0](h)
    d = h.shape[1] // 2
    return f_out[0](h[:, :d]), f_out[1](h[:, d:])


if __name__ == "__main__":
    # Small config: neurons = [state_dim, h1, h2, action_dim]
    neurons = [8, 32, 32, 4]
    batch = 4
    activations = [jnp.tanh, jnp.tanh]

    key = jax.random.PRNGKey(0)
    k_state, k_det, k_sto, k_noise = jax.random.split(key, 4)
    state = jax.random.normal(k_state, (batch, neurons[0]), jnp.float32)

    # ---------------- deterministic policy ----------------
    f_out_det = [jnp.tanh]
    params_det = init_params(k_det, neurons, "deterministic")
    fwd_det = make_policy_forward(params_det, policy_class="deterministic",
                                  activations=activations, f_out=f_out_det)
    action = jax.block_until_ready(fwd_det(state))
    ref = _reference_mlp(state, params_det, activations, f_out_det,
                         "deterministic", jnp.bfloat16)
    assert action.shape == (batch, neurons[-1])
    assert jnp.allclose(action, ref, atol=1e-4), "deterministic mismatch"

    # ---------------- stochastic policy (stats mode for verification) -------
    f_out_sto = [lambda x: x, jax.nn.softplus]   # (mean, cov-diag) transforms
    params_sto = init_params(k_sto, neurons, "stochastic")
    fwd_stats = make_policy_forward(params_sto, policy_class="stochastic",
                                    activations=activations, f_out=f_out_sto,
                                    return_stats=True)
    sample, mean, cov = fwd_stats(state, k_noise)
    sample = jax.block_until_ready(sample)
    mean_ref, cov_ref = _reference_mlp(state, params_sto, activations,
                                       f_out_sto, "stochastic", jnp.bfloat16)
    assert sample.shape == (batch, neurons[-1])
    assert jnp.allclose(mean, mean_ref, atol=1e-4), "mean mismatch"
    assert jnp.allclose(cov, cov_ref, atol=1e-4), "cov mismatch"
    eps_implied = (sample - mean) / cov          # should be ~N(0,1)
    assert bool(jnp.all(jnp.isfinite(eps_implied))), "non-finite noise"
    assert bool(jnp.all(jnp.abs(eps_implied) < 8.0)), "noise not ~N(0,1)"
    # Same key -> reproducible sample.
    sample2, _, _ = fwd_stats(state, k_noise)
    assert bool(jnp.array_equal(sample, sample2)), "not reproducible"

    # Fast path: sample-only output (matches Policy.forward return value).
    fwd_sto = make_policy_forward(params_sto, policy_class="stochastic",
                                  activations=activations, f_out=f_out_sto)
    sample_only = jax.block_until_ready(fwd_sto(state, k_noise))
    assert sample_only.shape == (batch, neurons[-1])
    assert jnp.allclose(sample_only, sample, atol=1e-4), "sample path mismatch"

    print("KERNEL_OK")
</pallas_src>

<mosaic_0001>
module attributes {stable_mosaic.version = 11 : i64} {
  func.func @kernel(%arg0: i32, %arg1: memref<16x16xbf16, #tpu.memory_space<vmem>>, %arg2: memref<16x128xbf16, #tpu.memory_space<vmem>>, %arg3: memref<1x128xf32, #tpu.memory_space<vmem>>, %arg4: memref<128x128xbf16, #tpu.memory_space<vmem>>, %arg5: memref<1x128xf32, #tpu.memory_space<vmem>>, %arg6: memref<128x128xbf16, #tpu.memory_space<vmem>>, %arg7: memref<1x128xf32, #tpu.memory_space<vmem>>, %arg8: memref<16x128xf32, #tpu.memory_space<vmem>>) attributes {dimension_semantics = [#tpu.dimension_semantics<parallel>], iteration_bounds = array<i64: 1>, scalar_prefetch = 0 : i64, scratch_operands = 0 : i64, tpu.core_type = #tpu.core_type<tc>, window_params = [{transform_indices = @transform_0, window_bounds = array<i64: 16, 16>}, {pipeline_mode = #tpu.pipeline_mode<synchronous>, transform_indices = @transform_1, window_bounds = array<i64: 16, 128>}, {pipeline_mode = #tpu.pipeline_mode<synchronous>, transform_indices = @transform_2, window_bounds = array<i64: 1, 128>}, {pipeline_mode = #tpu.pipeline_mode<synchronous>, transform_indices = @transform_3, window_bounds = array<i64: 128, 128>}, {pipeline_mode = #tpu.pipeline_mode<synchronous>, transform_indices = @transform_4, window_bounds = array<i64: 1, 128>}, {pipeline_mode = #tpu.pipeline_mode<synchronous>, transform_indices = @transform_5, window_bounds = array<i64: 128, 128>}, {pipeline_mode = #tpu.pipeline_mode<synchronous>, transform_indices = @transform_6, window_bounds = array<i64: 1, 128>}, {transform_indices = @transform_7, window_bounds = array<i64: 16, 128>}]} {
    %c0 = arith.constant 0 : index
    %c0_0 = arith.constant 0 : index
    %0 = vector.load %arg1[%c0, %c0_0] : memref<16x16xbf16, #tpu.memory_space<vmem>>, vector<16x16xbf16>
    %c0_1 = arith.constant 0 : index
    %c0_2 = arith.constant 0 : index
    %1 = vector.load %arg2[%c0_1, %c0_2] : memref<16x128xbf16, #tpu.memory_space<vmem>>, vector<16x128xbf16>
    %c0_3 = arith.constant 0 : index
    %c0_4 = arith.constant 0 : index
    %2 = vector.load %arg3[%c0_3, %c0_4] : memref<1x128xf32, #tpu.memory_space<vmem>>, vector<1x128xf32>
    %cst = arith.constant dense<0.000000e+00> : vector<16x128xf32>
    %3 = tpu.matmul %0, %1, %cst {dimension_numbers = #tpu.dot_dimension_numbers<[1], [0], [0], [1], [0, 0, 1, 1], [], []>} : vector<16x16xbf16>, vector<16x128xbf16>, vector<16x128xf32> -> vector<16x128xf32>
    %4 = vector.broadcast %2 : vector<1x128xf32> to vector<16x128xf32>
    %5 = arith.addf %3, %4 : vector<16x128xf32>
    %6 = math.tanh %5 : vector<16x128xf32>
    %7 = arith.truncf %6 : vector<16x128xf32> to vector<16x128xbf16>
    %c0_5 = arith.constant 0 : index
    %c0_6 = arith.constant 0 : index
    %8 = vector.load %arg4[%c0_5, %c0_6] : memref<128x128xbf16, #tpu.memory_space<vmem>>, vector<128x128xbf16>
    %c0_7 = arith.constant 0 : index
    %c0_8 = arith.constant 0 : index
    %9 = vector.load %arg5[%c0_7, %c0_8] : memref<1x128xf32, #tpu.memory_space<vmem>>, vector<1x128xf32>
    %cst_9 = arith.constant dense<0.000000e+00> : vector<16x128xf32>
    %10 = tpu.matmul %7, %8, %cst_9 {dimension_numbers = #tpu.dot_dimension_numbers<[1], [0], [0], [1], [0, 0, 1, 1], [], []>} : vector<16x128xbf16>, vector<128x128xbf16>, vector<16x128xf32> -> vector<16x128xf32>
    %11 = vector.broadcast %9 : vector<1x128xf32> to vector<16x128xf32>
    %12 = arith.addf %10, %11 : vector<16x128xf32>
    %13 = math.tanh %12 : vector<16x128xf32>
    %14 = arith.truncf %13 : vector<16x128xf32> to vector<16x128xbf16>
    %c0_10 = arith.constant 0 : index
    %c0_11 = arith.constant 0 : index
    %15 = vector.load %arg6[%c0_10, %c0_11] : memref<128x128xbf16, #tpu.memory_space<vmem>>, vector<128x128xbf16>
    %c0_12 = arith.constant 0 : index
    %c0_13 = arith.constant 0 : index
    %16 = vector.load %arg7[%c0_12, %c0_13] : memref<1x128xf32, #tpu.memory_space<vmem>>, vector<1x128xf32>
    %cst_14 = arith.constant dense<0.000000e+00> : vector<16x128xf32>
    %17 = tpu.matmul %14, %15, %cst_14 {dimension_numbers = #tpu.dot_dimension_numbers<[1], [0], [0], [1], [0, 0, 1, 1], [], []>} : vector<16x128xbf16>, vector<128x128xbf16>, vector<16x128xf32> -> vector<16x128xf32>
    %18 = vector.broadcast %16 : vector<1x128xf32> to vector<16x128xf32>
    %19 = arith.addf %17, %18 : vector<16x128xf32>
    %20 = math.tanh %19 : vector<16x128xf32>
    %c0_15 = arith.constant 0 : index
    %c0_16 = arith.constant 0 : index
    %21 = vector.load %arg8[%c0_15, %c0_16] : memref<16x128xf32, #tpu.memory_space<vmem>>, vector<16x128xf32>
    tpu.vector_store %arg8[%c0_15, %c0_16], %20 {strides = array<i32>} : memref<16x128xf32, #tpu.memory_space<vmem>>, vector<16x128xf32>,
    return
  }
  func.func @transform_0(%arg0: i32) -> (i32, i32) {
    %c0_i32 = arith.constant 0 : i32
    %c0_i32_0 = arith.constant 0 : i32
    return %arg0, %c0_i32 : i32, i32
  }
  func.func @transform_1(%arg0: i32) -> (i32, i32) {
    %c0_i32 = arith.constant 0 : i32
    %c0_i32_0 = arith.constant 0 : i32
    %c0_i32_1 = arith.constant 0 : i32
    return %c0_i32, %c0_i32_0 : i32, i32
  }
  func.func @transform_2(%arg0: i32) -> (i32, i32) {
    %c0_i32 = arith.constant 0 : i32
    %c0_i32_0 = arith.constant 0 : i32
    %c0_i32_1 = arith.constant 0 : i32
    return %c0_i32, %c0_i32_0 : i32, i32
  }
  func.func @transform_3(%arg0: i32) -> (i32, i32) {
    %c0_i32 = arith.constant 0 : i32
    %c0_i32_0 = arith.constant 0 : i32
    %c0_i32_1 = arith.constant 0 : i32
    return %c0_i32, %c0_i32_0 : i32, i32
  }
  func.func @transform_4(%arg0: i32) -> (i32, i32) {
    %c0_i32 = arith.constant 0 : i32
    %c0_i32_0 = arith.constant 0 : i32
    %c0_i32_1 = arith.constant 0 : i32
    return %c0_i32, %c0_i32_0 : i32, i32
  }
  func.func @transform_5(%arg0: i32) -> (i32, i32) {
    %c0_i32 = arith.constant 0 : i32
    %c0_i32_0 = arith.constant 0 : i32
    %c0_i32_1 = arith.constant 0 : i32
    return %c0_i32, %c0_i32_0 : i32, i32
  }
  func.func @transform_6(%arg0: i32) -> (i32, i32) {
    %c0_i32 = arith.constant 0 : i32
    %c0_i32_0 = arith.constant 0 : i32
    %c0_i32_1 = arith.constant 0 : i32
    return %c0_i32, %c0_i32_0 : i32, i32
  }
  func.func @transform_7(%arg0: i32) -> (i32, i32) {
    %c0_i32 = arith.constant 0 : i32
    %c0_i32_0 = arith.constant 0 : i32
    return %arg0, %c0_i32 : i32, i32
  }
}

</mosaic_0001>

<llo_original>
// kernel: forward.1
$region0: #{forward.1}
  #allocation0 [shape = 'u32[]', space=smem, size = 0x4, offset = 0x4, fixed_abs, tag = 'smem constant byte address 0x4 - core index']
  #allocation1 [shape = 'u32[144,128]{1,0:T(1,128)}', space=vmem, size = 0x12000, scoped, tag = 'internal scratch']
  %s0 = inlined_call_operand.vmem [shape: bf16[16,16], index: 0, kind: input, shape index: {}]
  %s1 = inlined_call_operand.vmem [shape: bf16[16,128], index: 1, kind: input, shape index: {}]
  %s2 = inlined_call_operand.vmem [shape: f32[1,128], index: 2, kind: input, shape index: {}]
  %s3 = inlined_call_operand.hbm [shape: bf16[128,128], index: 3, kind: input, shape index: {}]
  %s4 = inlined_call_operand.vmem [shape: f32[1,128], index: 4, kind: input, shape index: {}]
  %s5 = inlined_call_operand.hbm [shape: bf16[128,128], index: 5, kind: input, shape index: {}]
  %s6 = inlined_call_operand.vmem [shape: f32[1,128], index: 6, kind: input, shape index: {}]
  %s7 = inlined_call_operand.vmem [shape: f32[16,128], index: 7, kind: output, shape index: {}]
  %s8 = sld [smem:[#allocation0]]
  $region46: #{forward.1} parent=0
    _
  %s10 = ssub.s32 1, %s8
  %s11 = scalar_select 0, %s10, %s8
  $region1: #{forward.1} parent=0
    #allocation2 [shape = 'u8[32768]{0}', space=vmem, size = 0x8000, scoped, tag = 'input window, operand 3, single buffered']
    #allocation3 [shape = 's32[1]{0}', space=sflag, size = 0x4, scoped, tag = 'scoped memory for forward.1']
    #allocation4 [shape = 'u8[32768]{0}', space=vmem, size = 0x8000, scoped, tag = 'input window, operand 5, single buffered']
    #allocation5 [shape = 's32[1]{0}', space=sflag, size = 0x4, scoped, tag = 'scoped memory for forward.1']
    %12 = vsyncpa [#allocation3], 0
    %13 = vsyncpa [#allocation5], 0
    // Predicated region
    $region2: #{forward.1} parent=1 // pred_check
      _
    $region3: #{forward.1} parent=1 // pred_check_branch
      %15 = sbr.rel (0) target = $region5
    $region4: #{forward.1} parent=1 // pred_region
      _
    $region5: #{forward.1} parent=1 // pred_fallthru
      _
    // Predicated region
    $region6: #{forward.1} parent=1 // pred_check
      _
    $region7: #{forward.1} parent=1 // pred_check_branch
      %17 = sbr.rel (0) target = $region9
    $region8: #{forward.1} parent=1 // pred_region
      _
    $region9: #{forward.1} parent=1 // pred_fallthru
      _
    // Predicated region
    $region10: #{forward.1} parent=1 // pred_check
      _
    $region11: #{forward.1} parent=1 // pred_check_branch
      %19 = sbr.rel (0) target = $region13
    $region12: #{forward.1} parent=1 // pred_region
      _
    $region13: #{forward.1} parent=1 // pred_fallthru
      _
    // Predicated region
    $region14: #{forward.1} parent=1 // pred_check
      _
    $region15: #{forward.1} parent=1 // pred_check_branch
      %21 = sbr.rel (0) target = $region17
    $region16: #{forward.1} parent=1 // pred_region
      %s23 = ssub.s32 1024, 1024
      %24 = vsyncadd [#allocation3], %s23
      %s25 = sshll.u32 [#allocation2], 4
      %s26 = int_to_ptr.vmem [resolvable:$true] %s25
      %31 = dma.hbm_to_vmem [thread:$0]  %s3, 1024, %s26, [#allocation3], 64, 64, 4
    $region17: #{forward.1} parent=1 // pred_fallthru
      _
    // Predicated region
    $region18: #{forward.1} parent=1 // pred_check
      _
    $region19: #{forward.1} parent=1 // pred_check_branch
      %33 = sbr.rel (0) target = $region21
    $region20: #{forward.1} parent=1 // pred_region
      _
    $region21: #{forward.1} parent=1 // pred_fallthru
      _
    // Predicated region
    $region22: #{forward.1} parent=1 // pred_check
      _
    $region23: #{forward.1} parent=1 // pred_check_branch
      %35 = sbr.rel (0) target = $region25
    $region24: #{forward.1} parent=1 // pred_region
      %s37 = ssub.s32 1024, 1024
      %38 = vsyncadd [#allocation5], %s37
      %s39 = sshll.u32 [#allocation4], 4
      %s40 = int_to_ptr.vmem [resolvable:$true] %s39
      %45 = dma.hbm_to_vmem [thread:$0]  %s5, 1024, %s40, [#allocation5], 64, 64, 4
    $region25: #{forward.1} parent=1 // pred_fallthru
      _
    // Predicated region
    $region26: #{forward.1} parent=1 // pred_check
      _
    $region27: #{forward.1} parent=1 // pred_check_branch
      %47 = sbr.rel (0) target = $region29
    $region28: #{forward.1} parent=1 // pred_region
      _
    $region29: #{forward.1} parent=1 // pred_fallthru
      _
    // Predicated region
    $region30: #{forward.1} parent=1 // pred_check
      _
    $region31: #{forward.1} parent=1 // pred_check_branch
      %49 = sbr.rel (0) target = $region33
    $region32: #{forward.1} parent=1 // pred_region
      %50 = dma.done [#allocation3], 1024
    $region33: #{forward.1} parent=1 // pred_fallthru
      _
    // Predicated region
    $region34: #{forward.1} parent=1 // pred_check
      _
    $region35: #{forward.1} parent=1 // pred_check_branch
      %52 = sbr.rel (0) target = $region37
    $region36: #{forward.1} parent=1 // pred_region
      %53 = dma.done [#allocation5], 1024
    $region37: #{forward.1} parent=1 // pred_fallthru
      _
    %v55 = vld [vmem:[%s0] sm:$0xf]
    %v56 = vld [vmem:[%s0 + $0x4] sm:$0xf]
    %v57 = vld [vmem:[%s1] sm:$0xf]
    %v58 = vld [vmem:[%s1 + $0x4] sm:$0xf]
    %v59 = vld [vmem:[%s2] sm:$0x1]
    %v61 = vlaneseq
    %v62 = vshrl.u32 %v61, 7
    %v63 = vsub.s32 0, %v62
    %v64 = vrot.slane %v59, %v63
    %v68 = vunpack.c.l.b16 %v55
    %v69 = vunpack.c.l.b16 %v56
    %v70 = vpack.c.b16 %v69, %v68
    %v73 = vunpack.c.l.b16 %v57
    %v74 = vunpack.c.l.b16 %v58
    %v75 = vpack.c.b16 %v74, %v73
    %vm77 = vcmask 130048
    %v79 = vsel %vm77, %v70, 0
    %81 = vmatprep.subr.bf16.mxu0 0
    %82 = vmatpush1.bf16.msra.mxu0 0
    %83 = vmatprep.subr.bf16.mxu0 0
    %84 = vmatpush1.bf16.msra.mxu0 0
    %85 = vmatprep.subr.bf16.mxu0 0
    %86 = vmatpush1.bf16.msra.mxu0 0
    %87 = vmatprep.subr.bf16.mxu0 0
    %88 = vmatpush1.bf16.msra.mxu0 0
    %89 = vmatprep.subr.bf16.mxu0 0
    %90 = vmatpush1.bf16.msra.mxu0 0
    %91 = vmatprep.subr.bf16.mxu0 0
    %92 = vmatpush1.bf16.msra.mxu0 0
    %93 = vmatprep.subr.bf16.mxu0 0
    %94 = vmatpush1.bf16.msra.mxu0 0
    %95 = vmatprep.subr.bf16.mxu0 0
    %96 = vmatpush1.bf16.msra.mxu0 %v75
    %97 = vmatprep.subr.bf16.mxu0 0
    %98 = vmatpush2.bf16.msra.mxu0 0
    %99 = vmatprep.subr.bf16.mxu0 0
    %100 = vmatpush2.bf16.msra.mxu0 0
    %101 = vmatprep.subr.bf16.mxu0 0
    %102 = vmatpush2.bf16.msra.mxu0 0
    %103 = vmatprep.subr.bf16.mxu0 0
    %104 = vmatpush2.bf16.msra.mxu0 0
    %105 = vmatprep.subr.bf16.mxu0 0
    %106 = vmatpush2.bf16.msra.mxu0 0
    %107 = vmatprep.subr.bf16.mxu0 0
    %108 = vmatpush2.bf16.msra.mxu0 0
    %109 = vmatprep.subr.bf16.mxu0 0
    %110 = vmatpush2.bf16.msra.mxu0 0
    %111 = vmatprep.subr.bf16.mxu0 0
    %112 = vmatpush2.bf16.msra.mxu0 0
    %113 = vmatprep.mubr.bf16.mxu0 0
    %114 = vmatmul.mubr.bf16.gmra.mxu0 %v79
    %v115 = vpop.f32.mrf.mxu0
    %v116 = vadd.f32 %v64, %v115
    %v117 = vpop.f32.mrf.mxu0
    %v118 = vpop.f32.mrf.mxu0
    %v119 = vadd.f32 %v64, %v118
    %v120 = vpop.f32.mrf.mxu0
    %121 = vdwg.mxu0
    %v122 = vtanh.pop %v116
    %v123 = vtanh.pop %v119
    %v124 = vpack.c.bf16 %v123, %v122
    %v125 = vld [vmem:[#allocation2] sm:$0xf]
    %v126 = vld [vmem:[#allocation2 + $0x4] sm:$0xf]
    %v127 = vld [vmem:[#allocation2 + $0x8] sm:$0xf]
    %v128 = vld [vmem:[#allocation2 + $0xc] sm:$0xf]
    %v129 = vld [vmem:[#allocation2 + $0x10] sm:$0xf]
    %v130 = vld [vmem:[#allocation2 + $0x14] sm:$0xf]
    %v131 = vld [vmem:[#allocation2 + $0x18] sm:$0xf]
    %v132 = vld [vmem:[#allocation2 + $0x1c] sm:$0xf]
    %v133 = vld [vmem:[#allocation2 + $0x20] sm:$0xf]
    %v134 = vld [vmem:[#allocation2 + $0x24] sm:$0xf]
    %v135 = vld [vmem:[#allocation2 + $0x28] sm:$0xf]
    %v136 = vld [vmem:[#allocation2 + $0x2c] sm:$0xf]
    %v137 = vld [vmem:[#allocation2 + $0x30] sm:$0xf]
    %v138 = vld [vmem:[#allocation2 + $0x34] sm:$0xf]
    %v139 = vld [vmem:[#allocation2 + $0x38] sm:$0xf]
    %v140 = vld [vmem:[#allocation2 + $0x3c] sm:$0xf]
    %v141 = vld [vmem:[%s4] sm:$0x1]
    %v143 = vlaneseq
    %v144 = vshrl.u32 %v143, 7
    %v145 = vsub.s32 0, %v144
    %v146 = vrot.slane %v141, %v145
    %v164 = vunpack.c.l.b16 %v125
    %v165 = vunpack.c.l.b16 %v126
    %v166 = vunpack.c.l.b16 %v127
    %v167 = vunpack.c.l.b16 %v128
    %v168 = vunpack.c.l.b16 %v129
    %v169 = vunpack.c.l.b16 %v130
    %v170 = vunpack.c.l.b16 %v131
    %v171 = vunpack.c.l.b16 %v132
    %v172 = vunpack.c.l.b16 %v133
    %v173 = vunpack.c.l.b16 %v134
    %v174 = vunpack.c.l.b16 %v135
    %v175 = vunpack.c.l.b16 %v136
    %v176 = vunpack.c.l.b16 %v137
    %v177 = vunpack.c.l.b16 %v138
    %v178 = vunpack.c.l.b16 %v139
    %v179 = vunpack.c.l.b16 %v140
    %v180 = vpack.c.b16 %v165, %v164
    %v181 = vpack.c.b16 %v167, %v166
    %v182 = vpack.c.b16 %v169, %v168
    %v183 = vpack.c.b16 %v171, %v170
    %v184 = vpack.c.b16 %v173, %v172
    %v185 = vpack.c.b16 %v175, %v174
    %v186 = vpack.c.b16 %v177, %v176
    %v187 = vpack.c.b16 %v179, %v178
    %196 = vmatprep.subr.bf16.mxu0 0
    %197 = vmatpush1.bf16.msra.mxu0 %v187
    %198 = vmatprep.subr.bf16.mxu0 0
    %199 = vmatpush1.bf16.msra.mxu0 %v186
    %200 = vmatprep.subr.bf16.mxu0 0
    %201 = vmatpush1.bf16.msra.mxu0 %v185
    %202 = vmatprep.subr.bf16.mxu0 0
    %203 = vmatpush1.bf16.msra.mxu0 %v184
    %204 = vmatprep.subr.bf16.mxu0 0
    %205 = vmatpush1.bf16.msra.mxu0 %v183
    %206 = vmatprep.subr.bf16.mxu0 0
    %207 = vmatpush1.bf16.msra.mxu0 %v182
    %208 = vmatprep.subr.bf16.mxu0 0
    %209 = vmatpush1.bf16.msra.mxu0 %v181
    %210 = vmatprep.subr.bf16.mxu0 0
    %211 = vmatpush1.bf16.msra.mxu0 %v180
    %212 = vmatprep.subr.bf16.mxu0 0
    %213 = vmatpush2.bf16.msra.mxu0 0
    %214 = vmatprep.subr.bf16.mxu0 0
    %215 = vmatpush2.bf16.msra.mxu0 0
    %216 = vmatprep.subr.bf16.mxu0 0
    %217 = vmatpush2.bf16.msra.mxu0 0
    %218 = vmatprep.subr.bf16.mxu0 0
    %219 = vmatpush2.bf16.msra.mxu0 0
    %220 = vmatprep.subr.bf16.mxu0 0
    %221 = vmatpush2.bf16.msra.mxu0 0
    %222 = vmatprep.subr.bf16.mxu0 0
    %223 = vmatpush2.bf16.msra.mxu0 0
    %224 = vmatprep.subr.bf16.mxu0 0
    %225 = vmatpush2.bf16.msra.mxu0 0
    %226 = vmatprep.subr.bf16.mxu0 0
    %227 = vmatpush2.bf16.msra.mxu0 0
    %228 = vmatprep.mubr.bf16.mxu0 0
    %229 = vmatmul.mubr.bf16.gmra.mxu0 %v124
    %v230 = vpop.f32.mrf.mxu0
    %v231 = vadd.f32 %v146, %v230
    %v232 = vpop.f32.mrf.mxu0
    %v233 = vpop.f32.mrf.mxu0
    %v234 = vadd.f32 %v146, %v233
    %v235 = vpop.f32.mrf.mxu0
    %236 = vdwg.mxu0
    %v237 = vtanh.pop %v231
    %v238 = vtanh.pop %v234
    %v239 = vpack.c.bf16 %v238, %v237
    %v240 = vld [vmem:[#allocation4] sm:$0xf]
    %v241 = vld [vmem:[#allocation4 + $0x4] sm:$0xf]
    %v242 = vld [vmem:[#allocation4 + $0x8] sm:$0xf]
    %v243 = vld [vmem:[#allocation4 + $0xc] sm:$0xf]
    %v244 = vld [vmem:[#allocation4 + $0x10] sm:$0xf]
    %v245 = vld [vmem:[#allocation4 + $0x14] sm:$0xf]
    %v246 = vld [vmem:[#allocation4 + $0x18] sm:$0xf]
    %v247 = vld [vmem:[#allocation4 + $0x1c] sm:$0xf]
    %v248 = vld [vmem:[#allocation4 + $0x20] sm:$0xf]
    %v249 = vld [vmem:[#allocation4 + $0x24] sm:$0xf]
    %v250 = vld [vmem:[#allocation4 + $0x28] sm:$0xf]
    %v251 = vld [vmem:[#allocation4 + $0x2c] sm:$0xf]
    %v252 = vld [vmem:[#allocation4 + $0x30] sm:$0xf]
    %v253 = vld [vmem:[#allocation4 + $0x34] sm:$0xf]
    %v254 = vld [vmem:[#allocation4 + $0x38] sm:$0xf]
    %v255 = vld [vmem:[#allocation4 + $0x3c] sm:$0xf]
    %v256 = vld [vmem:[%s6] sm:$0x1]
    %v258 = vlaneseq
    %v259 = vshrl.u32 %v258, 7
    %v260 = vsub.s32 0, %v259
    %v261 = vrot.slane %v256, %v260
    %v279 = vunpack.c.l.b16 %v240
    %v280 = vunpack.c.l.b16 %v241
    %v281 = vunpack.c.l.b16 %v242
    %v282 = vunpack.c.l.b16 %v243
    %v283 = vunpack.c.l.b16 %v244
    %v284 = vunpack.c.l.b16 %v245
    %v285 = vunpack.c.l.b16 %v246
    %v286 = vunpack.c.l.b16 %v247
    %v287 = vunpack.c.l.b16 %v248
    %v288 = vunpack.c.l.b16 %v249
    %v289 = vunpack.c.l.b16 %v250
    %v290 = vunpack.c.l.b16 %v251
    %v291 = vunpack.c.l.b16 %v252
    %v292 = vunpack.c.l.b16 %v253
    %v293 = vunpack.c.l.b16 %v254
    %v294 = vunpack.c.l.b16 %v255
    %v295 = vpack.c.b16 %v280, %v279
    %v296 = vpack.c.b16 %v282, %v281
    %v297 = vpack.c.b16 %v284, %v283
    %v298 = vpack.c.b16 %v286, %v285
    %v299 = vpack.c.b16 %v288, %v287
    %v300 = vpack.c.b16 %v290, %v289
    %v301 = vpack.c.b16 %v292, %v291
    %v302 = vpack.c.b16 %v294, %v293
    %311 = vmatprep.subr.bf16.mxu0 0
    %312 = vmatpush1.bf16.msra.mxu0 %v302
    %313 = vmatprep.subr.bf16.mxu0 0
    %314 = vmatpush1.bf16.msra.mxu0 %v301
    %315 = vmatprep.subr.bf16.mxu0 0
    %316 = vmatpush1.bf16.msra.mxu0 %v300
    %317 = vmatprep.subr.bf16.mxu0 0
    %318 = vmatpush1.bf16.msra.mxu0 %v299
    %319 = vmatprep.subr.bf16.mxu0 0
    %320 = vmatpush1.bf16.msra.mxu0 %v298
    %321 = vmatprep.subr.bf16.mxu0 0
    %322 = vmatpush1.bf16.msra.mxu0 %v297
    %323 = vmatprep.subr.bf16.mxu0 0
    %324 = vmatpush1.bf16.msra.mxu0 %v296
    %325 = vmatprep.subr.bf16.mxu0 0
    %326 = vmatpush1.bf16.msra.mxu0 %v295
    %327 = vmatprep.subr.bf16.mxu0 0
    %328 = vmatpush2.bf16.msra.mxu0 0
    %329 = vmatprep.subr.bf16.mxu0 0
    %330 = vmatpush2.bf16.msra.mxu0 0
    %331 = vmatprep.subr.bf16.mxu0 0
    %332 = vmatpush2.bf16.msra.mxu0 0
    %333 = vmatprep.subr.bf16.mxu0 0
    %334 = vmatpush2.bf16.msra.mxu0 0
    %335 = vmatprep.subr.bf16.mxu0 0
    %336 = vmatpush2.bf16.msra.mxu0 0
    %337 = vmatprep.subr.bf16.mxu0 0
    %338 = vmatpush2.bf16.msra.mxu0 0
    %339 = vmatprep.subr.bf16.mxu0 0
    %340 = vmatpush2.bf16.msra.mxu0 0
    %341 = vmatprep.subr.bf16.mxu0 0
    %342 = vmatpush2.bf16.msra.mxu0 0
    %343 = vmatprep.mubr.bf16.mxu0 0
    %344 = vmatmul.mubr.bf16.gmra.mxu0 %v239
    %v345 = vpop.f32.mrf.mxu0
    %v346 = vadd.f32 %v261, %v345
    %v347 = vpop.f32.mrf.mxu0
    %v348 = vpop.f32.mrf.mxu0
    %v349 = vadd.f32 %v261, %v348
    %v350 = vpop.f32.mrf.mxu0
    %351 = vdwg.mxu0
    %v352 = vtanh.pop %v346
    %v353 = vtanh.pop %v349
    %354 = vst [vmem:[%s7] sm:$0xff] %v352
    %355 = vst [vmem:[%s7 + $0x8] sm:$0xff] %v353
    // Predicated region
    $region38: #{forward.1} parent=1 // pred_check
      _
    $region39: #{forward.1} parent=1 // pred_check_branch
      %357 = sbr.rel (0) target = $region41
    $region40: #{forward.1} parent=1 // pred_region
      _
    $region41: #{forward.1} parent=1 // pred_fallthru
      _
    // Predicated region
    $region42: #{forward.1} parent=1 // pred_check
      _
    $region43: #{forward.1} parent=1 // pred_check_branch
      %359 = sbr.rel (0) target = $region45
    $region44: #{forward.1} parent=1 // pred_region
      _
    $region45: #{forward.1} parent=1 // pred_fallthru
      _
    %360 = vsyncpa [#allocation3], 1
    %361 = vsyncpa [#allocation5], 1

</llo_original>
